<compile_context>
chip_gen: v7x
topology: tpu7x:2x2x1
jax: 0.10.0
libtpu: 0.0.40
codegen_flags: <defaults>
</compile_context>

<pallas_src>
import jax
import jax.numpy as jnp
from jax.experimental import pallas as pl
from jax.experimental.pallas import tpu as pltpu

LANE = 128                              # vreg lane width
TARGET_BLOCK_BYTES = 2 * 1024 * 1024    # ~2 MiB per block (portable v5e/v6e/v7x)

# Candidate lane widths, widest first (lane-dense stores are the big lever).
_WIDTH_CANDIDATES = (32768, 16384, 8192, 4096, 2048, 1024, 512, 256, 128)


def _mish_kernel(x_ref, o_ref):
    x = x_ref[...].astype(jnp.float32)
    # mish(x) = x * tanh(softplus(x)).  With t = exp(min(x, 20)):
    #   tanh(log1p(t)) = t*(t+2) / (t*(t+2) + 2)
    # One EUP transcendental + one divide; no overflow in f32 (u <= ~2.4e17),
    # and the x -> -inf limit (x * e^x -> 0) is preserved.
    t = jnp.exp(jnp.minimum(x, 20.0))
    u = t * (t + 2.0)
    o_ref[...] = (x * (u / (u + 2.0))).astype(o_ref.dtype)


def _sublane_align(itemsize):
    # 8 sublanes for 32-bit, sub-32-bit dtypes pack along sublanes.
    return 8 * max(1, 4 // max(1, min(int(itemsize), 4)))


def _ceil_to(a, m):
    return -(-a // m) * m


def _choose_layout(n, itemsize):
    """Pick (width, rows, row_tile, padded) for a lane-dense (rows, width) slab."""
    align = _sublane_align(itemsize)
    block_elems = max(TARGET_BLOCK_BYTES // itemsize, align * LANE)

    # Prefer the widest lane dim that (a) divides n exactly -> zero-copy reshape
    # and (b) still yields at least `align` rows; else any exact divisor.
    width = None
    for w in _WIDTH_CANDIDATES:
        if n % w == 0 and n // w >= align:
            width = w
            break
    if width is None:
        for w in _WIDTH_CANDIDATES:
            if n % w == 0:
                width = w
                break
    padded = width is None
    if padded:
        # Truly ragged (n not a multiple of 128): minimal lane-dense pad.
        # TODO(synk): for large ragged inputs, mask the tail in-kernel (or DMA a
        # flat HBM ref manually) to drop the pad/un-pad extra HBM passes.
        width = 512 if n >= 512 * align else LANE

    rows = -(-n // width)
    if padded:
        rows = _ceil_to(rows, align)

    # Rows per grid step: as many as fit the target block bytes, sublane-aligned.
    max_rows = max(align, (block_elems // width) // align * align)
    if rows <= max_rows:
        if rows >= 2 * align:
            # Split medium tensors into two blocks so both v7x TCs get work.
            row_tile = _ceil_to(-(-rows // 2), align)
        else:
            row_tile = rows                       # single full-extent block
    else:
        row_tile = max_rows
        g = -(-rows // row_tile)
        if g % 2:
            # Best-effort even grid so the two v7x TensorCores stay balanced.
            row_tile = max(align, _ceil_to(-(-rows // (g + 1)), align))
    # Note: rows need not be a multiple of row_tile; Pallas masks the partial
    # last block (no round-up => no extra HBM traffic, no extra padding).
    return width, rows, row_tile, padded


def _semantics_candidates():
    cands = []
    core_par = getattr(pltpu, "CORE_PARALLEL", None)
    if core_par is not None:
        cands.append((core_par,))     # shard grid across TensorCores (v7x: 2 TCs)
    cands.append(("parallel",))       # portable fallback
    return cands


_SEMANTICS = _semantics_candidates()
_SEM_IDX = [0]   # module-level cache of the first semantics that lowers cleanly


def _mish_slab(slab, row_tile):
    rows, width = slab.shape
    nelem = rows * width
    grid = (pl.cdiv(rows, row_tile),)

    def build(sem):
        return pl.pallas_call(
            _mish_kernel,
            out_shape=jax.ShapeDtypeStruct((rows, width), slab.dtype),
            grid_spec=pltpu.PrefetchScalarGridSpec(
                num_scalar_prefetch=0,
                grid=grid,
                in_specs=[pl.BlockSpec((row_tile, width), lambda i: (i, 0))],
                out_specs=pl.BlockSpec((row_tile, width), lambda i: (i, 0)),
            ),
            compiler_params=pltpu.CompilerParams(dimension_semantics=sem),
            cost_estimate=pl.CostEstimate(
                flops=6 * nelem,
                transcendentals=nelem,
                bytes_accessed=2 * nelem * slab.dtype.itemsize),
        )

    while True:
        sem = _SEMANTICS[_SEM_IDX[0]]
        try:
            return build(sem)(slab)
        except Exception:
            # CORE_PARALLEL not supported on this chip / JAX build -> fall back.
            if _SEM_IDX[0] + 1 >= len(_SEMANTICS):
                raise
            _SEM_IDX[0] += 1


def mish(x):
    """Elementwise Mish: x * tanh(F.softplus(x)) (PyTorch semantics, threshold=20)."""
    orig_shape = x.shape
    n = int(x.size)
    if n == 0:
        return x

    itemsize = jnp.dtype(x.dtype).itemsize
    width, rows, row_tile, padded = _choose_layout(n, itemsize)

    flat = x.reshape(-1)
    if padded:
        flat = jnp.pad(flat, (0, rows * width - n))   # mish(0) == 0, safe
    slab = flat.reshape(rows, width)

    out = _mish_slab(slab, row_tile)

    if padded:
        out = out.reshape(-1)[:n]
    return out.reshape(orig_shape)


def _mish_ref(x):
    xf = x.astype(jnp.float32)
    sp = jnp.where(xf > 20.0, xf, jnp.log1p(jnp.exp(jnp.minimum(xf, 20.0))))
    return (xf * jnp.tanh(sp)).astype(x.dtype)


if __name__ == "__main__":
    key = jax.random.PRNGKey(0)
    k0, k1 = jax.random.split(key)

    # NCHW activations consistent with the AlexNet-style module (small shape).
    x = jax.random.normal(k0, (2, 4, 16, 16), dtype=jnp.float32) * 3.0
    y = jax.block_until_ready(mish(x))
    y_ref = _mish_ref(x)
    assert y.shape == x.shape and y.dtype == x.dtype
    assert jnp.allclose(y, y_ref, atol=1e-5, rtol=1e-5)

    # Ragged element count (not a multiple of 128) -> padded fallback path.
    x2 = jax.random.normal(k1, (2, 3, 13, 13), dtype=jnp.float32) * 3.0
    y2 = jax.block_until_ready(mish(x2))
    assert jnp.allclose(y2, _mish_ref(x2), atol=1e-5, rtol=1e-5)

    # bf16 path exercises the dtype-aware (16, 128) sublane alignment.
    x3 = (jax.random.normal(k1, (2, 8, 16, 16), dtype=jnp.float32) * 3.0
          ).astype(jnp.bfloat16)
    y3 = jax.block_until_ready(mish(x3))
    assert y3.shape == x3.shape and y3.dtype == jnp.bfloat16
    assert jnp.allclose(y3.astype(jnp.float32), _mish_ref(x3).astype(jnp.float32),
                        atol=2e-2, rtol=2e-2)

    print("KERNEL_OK")
</pallas_src>

<mosaic_0001>
module attributes {stable_mosaic.version = 11 : i64} {
  func.func @_mish_kernel(%arg0: i32, %arg1: memref<8x256xf32, #tpu.memory_space<vmem>>, %arg2: memref<8x256xf32, #tpu.memory_space<vmem>>) attributes {dimension_semantics = [#tpu.dimension_semantics<core_parallel>], iteration_bounds = array<i64: 1>, scalar_prefetch = 0 : i64, scratch_operands = 0 : i64, tpu.core_type = #tpu.core_type<tc>, window_params = [{transform_indices = @transform_0, window_bounds = array<i64: 8, 256>}, {transform_indices = @transform_1, window_bounds = array<i64: 8, 256>}]} {
    %c0 = arith.constant 0 : index
    %c0_0 = arith.constant 0 : index
    %0 = vector.load %arg1[%c0, %c0_0] : memref<8x256xf32, #tpu.memory_space<vmem>>, vector<8x256xf32>
    %cst = arith.constant 2.000000e+01 : f32
    %1 = vector.broadcast %cst : f32 to vector<8x256xf32>
    %2 = arith.minimumf %0, %1 : vector<8x256xf32>
    %3 = math.exp %2 : vector<8x256xf32>
    %cst_1 = arith.constant 2.000000e+00 : f32
    %4 = vector.broadcast %cst_1 : f32 to vector<8x256xf32>
    %5 = arith.addf %3, %4 : vector<8x256xf32>
    %6 = arith.mulf %3, %5 : vector<8x256xf32>
    %cst_2 = arith.constant 2.000000e+00 : f32
    %7 = vector.broadcast %cst_2 : f32 to vector<8x256xf32>
    %8 = arith.addf %6, %7 : vector<8x256xf32>
    %9 = arith.divf %6, %8 : vector<8x256xf32>
    %10 = arith.mulf %0, %9 : vector<8x256xf32>
    %c0_3 = arith.constant 0 : index
    %c0_4 = arith.constant 0 : index
    %11 = vector.load %arg2[%c0_3, %c0_4] : memref<8x256xf32, #tpu.memory_space<vmem>>, vector<8x256xf32>
    tpu.vector_store %arg2[%c0_3, %c0_4], %10 {strides = array<i32>} : memref<8x256xf32, #tpu.memory_space<vmem>>, vector<8x256xf32>,
    return
  }
  func.func @transform_0(%arg0: i32) -> (i32, i32) {
    %c0_i32 = arith.constant 0 : i32
    %c0_i32_0 = arith.constant 0 : i32
    return %arg0, %c0_i32 : i32, i32
  }
  func.func @transform_1(%arg0: i32) -> (i32, i32) {
    %c0_i32 = arith.constant 0 : i32
    %c0_i32_0 = arith.constant 0 : i32
    return %arg0, %c0_i32 : i32, i32
  }
}

module attributes {stable_mosaic.version = 11 : i64} {
  func.func @_mish_kernel(%arg0: i32, %arg1: memref<8x256xf32, #tpu.memory_space<vmem>>, %arg2: memref<8x256xf32, #tpu.memory_space<vmem>>) attributes {dimension_semantics = [#tpu.dimension_semantics<parallel>], iteration_bounds = array<i64: 1>, scalar_prefetch = 0 : i64, scratch_operands = 0 : i64, tpu.core_type = #tpu.core_type<tc>, window_params = [{transform_indices = @transform_0, window_bounds = array<i64: 8, 256>}, {transform_indices = @transform_1, window_bounds = array<i64: 8, 256>}]} {
    %c0 = arith.constant 0 : index
    %c0_0 = arith.constant 0 : index
    %0 = vector.load %arg1[%c0, %c0_0] : memref<8x256xf32, #tpu.memory_space<vmem>>, vector<8x256xf32>
    %cst = arith.constant 2.000000e+01 : f32
    %1 = vector.broadcast %cst : f32 to vector<8x256xf32>
    %2 = arith.minimumf %0, %1 : vector<8x256xf32>
    %3 = math.exp %2 : vector<8x256xf32>
    %cst_1 = arith.constant 2.000000e+00 : f32
    %4 = vector.broadcast %cst_1 : f32 to vector<8x256xf32>
    %5 = arith.addf %3, %4 : vector<8x256xf32>
    %6 = arith.mulf %3, %5 : vector<8x256xf32>
    %cst_2 = arith.constant 2.000000e+00 : f32
    %7 = vector.broadcast %cst_2 : f32 to vector<8x256xf32>
    %8 = arith.addf %6, %7 : vector<8x256xf32>
    %9 = arith.divf %6, %8 : vector<8x256xf32>
    %10 = arith.mulf %0, %9 : vector<8x256xf32>
    %c0_3 = arith.constant 0 : index
    %c0_4 = arith.constant 0 : index
    %11 = vector.load %arg2[%c0_3, %c0_4] : memref<8x256xf32, #tpu.memory_space<vmem>>, vector<8x256xf32>
    tpu.vector_store %arg2[%c0_3, %c0_4], %10 {strides = array<i32>} : memref<8x256xf32, #tpu.memory_space<vmem>>, vector<8x256xf32>,
    return
  }
  func.func @transform_0(%arg0: i32) -> (i32, i32) {
    %c0_i32 = arith.constant 0 : i32
    %c0_i32_0 = arith.constant 0 : i32
    return %arg0, %c0_i32 : i32, i32
  }
  func.func @transform_1(%arg0: i32) -> (i32, i32) {
    %c0_i32 = arith.constant 0 : i32
    %c0_i32_0 = arith.constant 0 : i32
    return %arg0, %c0_i32 : i32, i32
  }
}

</mosaic_0001>

<llo_original>
// kernel: tpu_custom_call.1
$region0: #{tpu_custom_call.1}
  #allocation0 [shape = 'u32[]', space=smem, size = 0x4, offset = 0x4, fixed_abs, tag = 'smem constant byte address 0x4 - core index']
  #allocation1 [shape = 'u32[144,128]{1,0:T(1,128)}', space=vmem, size = 0x12000, scoped, tag = 'internal scratch']
  %s0 = inlined_call_operand.hbm [shape: f32[8,256], index: 0, kind: input, shape index: {}]
  %s1 = inlined_call_operand.hbm [shape: f32[8,256], index: 1, kind: output, shape index: {}]
  %s2 = sld [smem:[#allocation0]]
  $region18: #{tpu_custom_call.1} parent=0
    _
  %s4 = ssub.s32 1, %s2
  %s5 = scalar_select 0, %s4, %s2
  $region1: #{tpu_custom_call.1} parent=0
    #allocation2 [shape = 'u8[8192]{0}', space=vmem, size = 0x2000, scoped, tag = 'input window, operand 0, single buffered']
    #allocation3 [shape = 's32[1]{0}', space=sflag, size = 0x4, scoped, tag = 'scoped memory for tpu_custom_call.1']
    #allocation4 [shape = 's32[1]{0}', space=sflag, size = 0x4, scoped, tag = 'scoped memory for tpu_custom_call.1']
    #allocation5 [shape = 'u8[8192]{0}', space=vmem, size = 0x2000, scoped, tag = 'output window, operand 0, single buffered']
    %6 = vsyncpa [#allocation3], 0
    %7 = vsyncpa [#allocation4], 0
    // Predicated region
    $region2: #{tpu_custom_call.1} parent=1 // pred_check
      _
    $region3: #{tpu_custom_call.1} parent=1 // pred_check_branch
      %9 = sbr.rel (0) target = $region5
    $region4: #{tpu_custom_call.1} parent=1 // pred_region
      %s11 = ssub.s32 256, 256
      %12 = vsyncadd [#allocation3], %s11
      %s13 = smul.addr %s5, 2
      %s14 = smul.addr %s13, 128
      %s15 = scalar_lea.hbm %s0, %s14
      %s17 = sshll.u32 [#allocation2], 4
      %s18 = int_to_ptr.vmem [resolvable:$true] %s17
      %20 = dma.hbm_to_vmem [thread:$0]  %s15, 256, %s18, [#allocation3]
    $region5: #{tpu_custom_call.1} parent=1 // pred_fallthru
      _
    // Predicated region
    $region6: #{tpu_custom_call.1} parent=1 // pred_check
      _
    $region7: #{tpu_custom_call.1} parent=1 // pred_check_branch
      %22 = sbr.rel (0) target = $region9
    $region8: #{tpu_custom_call.1} parent=1 // pred_region
      %23 = dma.done [#allocation3], 256
    $region9: #{tpu_custom_call.1} parent=1 // pred_fallthru
      _
    %v24 = vld [vmem:[#allocation2] sm:$0xff]
    %v25 = vld [vmem:[#allocation2 + $0x8] sm:$0xff]
    %v26 = vmin.f32 %v24, 20.0
    %v27 = vmin.f32 %v25, 20.0
    %v28 = vmul.f32 %v26, 1.442695
    %v29 = vpow.pop %v28
    %v30 = vmul.f32 %v27, 1.442695
    %v31 = vpow.pop %v30
    %v32 = vadd.f32 %v29, 2.0
    %v33 = vadd.f32 %v31, 2.0
    %v34 = vmul.f32 %v29, %v32
    %v35 = vmul.f32 %v31, %v33
    %v36 = vadd.f32 %v34, 2.0
    %v37 = vadd.f32 %v35, 2.0
    %v38 = vrcp.pop %v36
    %v39 = vmul.f32 %v34, %v38
    %v40 = vrcp.pop %v37
    %v41 = vmul.f32 %v35, %v40
    %v42 = vmul.f32 %v24, %v39
    %v43 = vmul.f32 %v25, %v41
    %44 = vst [vmem:[#allocation5] sm:$0xff] %v42
    %45 = vst [vmem:[#allocation5 + $0x8] sm:$0xff] %v43
    // Predicated region
    $region10: #{tpu_custom_call.1} parent=1 // pred_check
      _
    $region11: #{tpu_custom_call.1} parent=1 // pred_check_branch
      %47 = sbr.rel (0) target = $region13
    $region12: #{tpu_custom_call.1} parent=1 // pred_region
      %s49 = ssub.s32 256, 256
      %50 = vsyncadd [#allocation4], %s49
      %s51 = smul.addr %s5, 2
      %s52 = smul.addr %s51, 128
      %s53 = scalar_lea.hbm %s1, %s52
      %s55 = sshll.u32 [#allocation5], 4
      %s56 = int_to_ptr.vmem [resolvable:$true] %s55
      %58 = dma.vmem_to_hbm [thread:$0]  %s56, 256, %s53, [#allocation4]
    $region13: #{tpu_custom_call.1} parent=1 // pred_fallthru
      _
    // Predicated region
    $region14: #{tpu_custom_call.1} parent=1 // pred_check
      _
    $region15: #{tpu_custom_call.1} parent=1 // pred_check_branch
      %60 = sbr.rel (0) target = $region17
    $region16: #{tpu_custom_call.1} parent=1 // pred_region
      %61 = dma.done [#allocation4], 256
    $region17: #{tpu_custom_call.1} parent=1 // pred_fallthru
      _
    %62 = vsyncpa [#allocation3], 1
    %63 = vsyncpa [#allocation4], 1

// kernel: tpu_custom_call.1
$region0: #{tpu_custom_call.1}
  #allocation0 [shape = 'u32[]', space=smem, size = 0x4, offset = 0x4, fixed_abs, tag = 'smem constant byte address 0x4 - core index']
  #allocation1 [shape = 'u32[144,128]{1,0:T(1,128)}', space=vmem, size = 0x12000, scoped, tag = 'internal scratch']
  %s0 = inlined_call_operand.hbm [shape: f32[8,256], index: 0, kind: input, shape index: {}]
  %s1 = inlined_call_operand.hbm [shape: f32[8,256], index: 1, kind: output, shape index: {}]
  %s2 = sld [smem:[#allocation0]]
  $region18: #{tpu_custom_call.1} parent=0
    _
  %s4 = ssub.s32 1, %s2
  %s5 = scalar_select 0, %s4, %s2
  $region1: #{tpu_custom_call.1} parent=0
    #allocation2 [shape = 'u8[8192]{0}', space=vmem, size = 0x2000, scoped, tag = 'input window, operand 0, single buffered']
    #allocation3 [shape = 's32[1]{0}', space=sflag, size = 0x4, scoped, tag = 'scoped memory for tpu_custom_call.1']
    #allocation4 [shape = 's32[1]{0}', space=sflag, size = 0x4, scoped, tag = 'scoped memory for tpu_custom_call.1']
    #allocation5 [shape = 'u8[8192]{0}', space=vmem, size = 0x2000, scoped, tag = 'output window, operand 0, single buffered']
    %6 = vsyncpa [#allocation3], 0
    %7 = vsyncpa [#allocation4], 0
    // Predicated region
    $region2: #{tpu_custom_call.1} parent=1 // pred_check
      _
    $region3: #{tpu_custom_call.1} parent=1 // pred_check_branch
      %9 = sbr.rel (0) target = $region5
    $region4: #{tpu_custom_call.1} parent=1 // pred_region
      %s11 = ssub.s32 256, 256
      %12 = vsyncadd [#allocation3], %s11
      %s14 = sshll.u32 [#allocation2], 4
      %s15 = int_to_ptr.vmem [resolvable:$true] %s14
      %17 = dma.hbm_to_vmem [thread:$0]  %s0, 256, %s15, [#allocation3]
    $region5: #{tpu_custom_call.1} parent=1 // pred_fallthru
      _
    // Predicated region
    $region6: #{tpu_custom_call.1} parent=1 // pred_check
      _
    $region7: #{tpu_custom_call.1} parent=1 // pred_check_branch
      %19 = sbr.rel (0) target = $region9
    $region8: #{tpu_custom_call.1} parent=1 // pred_region
      %20 = dma.done [#allocation3], 256
    $region9: #{tpu_custom_call.1} parent=1 // pred_fallthru
      _
    %v21 = vld [vmem:[#allocation2] sm:$0xff]
    %v22 = vld [vmem:[#allocation2 + $0x8] sm:$0xff]
    %v23 = vmin.f32 %v21, 20.0
    %v24 = vmin.f32 %v22, 20.0
    %v25 = vmul.f32 %v23, 1.442695
    %v26 = vpow.pop %v25
    %v27 = vmul.f32 %v24, 1.442695
    %v28 = vpow.pop %v27
    %v29 = vadd.f32 %v26, 2.0
    %v30 = vadd.f32 %v28, 2.0
    %v31 = vmul.f32 %v26, %v29
    %v32 = vmul.f32 %v28, %v30
    %v33 = vadd.f32 %v31, 2.0
    %v34 = vadd.f32 %v32, 2.0
    %v35 = vrcp.pop %v33
    %v36 = vmul.f32 %v31, %v35
    %v37 = vrcp.pop %v34
    %v38 = vmul.f32 %v32, %v37
    %v39 = vmul.f32 %v21, %v36
    %v40 = vmul.f32 %v22, %v38
    %41 = vst [vmem:[#allocation5] sm:$0xff] %v39
    %42 = vst [vmem:[#allocation5 + $0x8] sm:$0xff] %v40
    // Predicated region
    $region10: #{tpu_custom_call.1} parent=1 // pred_check
      _
    $region11: #{tpu_custom_call.1} parent=1 // pred_check_branch
      %44 = sbr.rel (0) target = $region13
    $region12: #{tpu_custom_call.1} parent=1 // pred_region
      %s46 = ssub.s32 256, 256
      %47 = vsyncadd [#allocation4], %s46
      %s49 = sshll.u32 [#allocation5], 4
      %s50 = int_to_ptr.vmem [resolvable:$true] %s49
      %52 = dma.vmem_to_hbm [thread:$0]  %s50, 256, %s1, [#allocation4]
    $region13: #{tpu_custom_call.1} parent=1 // pred_fallthru
      _
    // Predicated region
    $region14: #{tpu_custom_call.1} parent=1 // pred_check
      _
    $region15: #{tpu_custom_call.1} parent=1 // pred_check_branch
      %54 = sbr.rel (0) target = $region17
    $region16: #{tpu_custom_call.1} parent=1 // pred_region
      %55 = dma.done [#allocation4], 256
    $region17: #{tpu_custom_call.1} parent=1 // pred_fallthru
      _
    %56 = vsyncpa [#allocation3], 1
    %57 = vsyncpa [#allocation4], 1

</llo_original>
